<compile_context>
chip_gen: v6e
topology: v6e:2x2x1
jax: 0.10.0
libtpu: 0.0.40
codegen_flags: <defaults>
</compile_context>

<pallas_src>
import jax
import jax.numpy as jnp
from jax.experimental import pallas as pl
from jax.experimental.pallas import tpu as pltpu

BN_EPS = 1e-5            # torch.nn.BatchNorm1d default eps
LANE = 128               # TPU lane width
MXU_DTYPE = jnp.bfloat16


def _round_up(n, m):
    return ((n + m - 1) // m) * m


def _deep_tower_kernel(x_ref, *refs):
    """Whole deep tower in one grid step.

    x_ref  : (B, D0p)        f32   zero-padded input activations (resident)
    refs   : w_0 ... w_{L-1} bf16  per-layer zero-padded weights (K_pad_l, N_pad_l)
             o_ref           f32   (B, N_pad_last) output (resident, written once)
    """
    *w_refs, o_ref = refs
    inv_b = 1.0 / x_ref.shape[0]            # static batch size
    n_layers = len(w_refs)

    h = x_ref[...].astype(MXU_DTYPE)        # bf16 activation carrier
    out = None
    for idx, w_ref in enumerate(w_refs):
        # Linear (bias dropped: it cancels under the batch-mean subtraction).
        y = jnp.dot(h, w_ref[...], preferred_element_type=jnp.float32)

        # BatchNorm1d(affine=False), training-mode batch stats, two-pass variance.
        mean = jnp.sum(y, axis=0, keepdims=True) * inv_b
        c = y - mean
        var = jnp.sum(c * c, axis=0, keepdims=True) * inv_b   # biased variance
        out = jnp.maximum(c * jax.lax.rsqrt(var + BN_EPS), 0.0)   # BN + ReLU, f32

        if idx + 1 < n_layers:
            h = out.astype(MXU_DTYPE)       # bf16 carrier for the next matmul

    o_ref[...] = out                         # single lane-dense f32 store


def prepare_deep_params(params, input_dim):
    """One-time parameter packing (off the hot path).

    Pads each weight to a rectangular lane-dense tile and casts to bf16.
    Biases are intentionally not packed (mathematically dead under
    training-mode, affine-free BatchNorm).
    """
    widths = [input_dim] + [w.shape[1] for w, _ in params]
    w_padded = []
    for (w, _b), d_in, d_out in zip(params, widths[:-1], widths[1:]):
        kp = _round_up(d_in, LANE)
        np_ = _round_up(d_out, LANE)
        wp = jnp.pad(w.astype(MXU_DTYPE), ((0, kp - d_in), (0, np_ - d_out)))
        w_padded.append(wp)
    return tuple(w_padded), widths


def deep_forward(x, w_padded, out_dim):
    """Fused deep-tower forward.  `w_padded` comes from prepare_deep_params."""
    B, d_in = x.shape
    d_in_pad = w_padded[0].shape[0]
    d_out_pad = w_padded[-1].shape[1]

    x_pad = jnp.pad(x.astype(jnp.float32), ((0, 0), (0, d_in_pad - d_in)))

    out_pad = pl.pallas_call(
        _deep_tower_kernel,
        out_shape=jax.ShapeDtypeStruct((B, d_out_pad), jnp.float32),
        grid=(1,),
        in_specs=[pl.BlockSpec((B, d_in_pad), lambda i: (0, 0))]
                + [pl.BlockSpec(w.shape, lambda i: (0, 0)) for w in w_padded],
        out_specs=pl.BlockSpec((B, d_out_pad), lambda i: (0, 0)),
        compiler_params=pltpu.CompilerParams(
            dimension_semantics=("arbitrary",),
            vmem_limit_bytes=32 * 1024 * 1024,   # ~100 KB of tiles; huge headroom
        ),
    )(x_pad, *w_padded)

    return out_pad[:, :out_dim]


def init_deep_params(key, input_dim, deep_layers):
    """Deterministic torch-Linear-style init: U(-1/sqrt(fan_in), 1/sqrt(fan_in))."""
    dims = [input_dim] + list(deep_layers)
    params = []
    for d_in, d_out in zip(dims[:-1], dims[1:]):
        key, kw, kb = jax.random.split(key, 3)
        bound = 1.0 / (d_in ** 0.5)
        w = jax.random.uniform(kw, (d_in, d_out), jnp.float32, -bound, bound)
        b = jax.random.uniform(kb, (d_out,), jnp.float32, -bound, bound)
        params.append((w, b))
    return params


def _deep_reference(x, params):
    """Pure-JAX torch-semantics reference (f32 matmul, bias kept, two-pass var)."""
    h = x.astype(jnp.float32)
    for w, b in params:
        y = jnp.dot(h, w, precision=jax.lax.Precision.HIGHEST) + b
        mean = jnp.mean(y, axis=0, keepdims=True)
        var = jnp.mean((y - mean) ** 2, axis=0, keepdims=True)
        h = jnp.maximum((y - mean) / jnp.sqrt(var + BN_EPS), 0.0)
    return h


if __name__ == "__main__":
    key = jax.random.PRNGKey(0)
    k_x, k_p = jax.random.split(key)

    batch = 8
    input_dim = 32
    deep_layers = [64, 32, 16]   # Deep(input_dim=32, deep_layers=[64, 32, 16])

    x = jax.random.normal(k_x, (batch, input_dim), dtype=jnp.float32)
    params = init_deep_params(k_p, input_dim, deep_layers)

    # One-time weight packing, off the per-call hot path.
    w_padded, widths = prepare_deep_params(params, input_dim)

    fwd = jax.jit(deep_forward, static_argnums=(2,))
    out = fwd(x, w_padded, widths[-1])
    out = jax.block_until_ready(out)

    ref = _deep_reference(x, params)
    assert out.shape == (batch, deep_layers[-1])
    # Kernel uses bf16 MXU operands (f32 accumulation) and drops the
    # mathematically-dead Linear bias; compare against a true-f32 torch-style
    # reference with a modest tolerance.
    max_err = float(jnp.max(jnp.abs(out - ref)))
    assert jnp.allclose(out, ref, atol=5e-2, rtol=5e-2), max_err

    print("KERNEL_OK")
</pallas_src>

<mosaic_0001>
module attributes {stable_mosaic.version = 11 : i64} {
  func.func @_deep_tower_kernel(%arg0: i32, %arg1: memref<8x128xf32, #tpu.memory_space<vmem>>, %arg2: memref<128x128xbf16, #tpu.memory_space<vmem>>, %arg3: memref<128x128xbf16, #tpu.memory_space<vmem>>, %arg4: memref<128x128xbf16, #tpu.memory_space<vmem>>, %arg5: memref<8x128xf32, #tpu.memory_space<vmem>>) attributes {dimension_semantics = [#tpu.dimension_semantics<arbitrary>], iteration_bounds = array<i64: 1>, scalar_prefetch = 0 : i64, scratch_operands = 0 : i64, tpu.core_type = #tpu.core_type<tc>, window_params = [{pipeline_mode = #tpu.pipeline_mode<synchronous>, transform_indices = @transform_0, window_bounds = array<i64: 8, 128>}, {pipeline_mode = #tpu.pipeline_mode<synchronous>, transform_indices = @transform_1, window_bounds = array<i64: 128, 128>}, {pipeline_mode = #tpu.pipeline_mode<synchronous>, transform_indices = @transform_2, window_bounds = array<i64: 128, 128>}, {pipeline_mode = #tpu.pipeline_mode<synchronous>, transform_indices = @transform_3, window_bounds = array<i64: 128, 128>}, {pipeline_mode = #tpu.pipeline_mode<synchronous>, transform_indices = @transform_4, window_bounds = array<i64: 8, 128>}]} {
    %c0 = arith.constant 0 : index
    %c0_0 = arith.constant 0 : index
    %0 = vector.load %arg1[%c0, %c0_0] : memref<8x128xf32, #tpu.memory_space<vmem>>, vector<8x128xf32>
    %1 = arith.truncf %0 : vector<8x128xf32> to vector<8x128xbf16>
    %c0_1 = arith.constant 0 : index
    %c0_2 = arith.constant 0 : index
    %2 = vector.load %arg2[%c0_1, %c0_2] : memref<128x128xbf16, #tpu.memory_space<vmem>>, vector<128x128xbf16>
    %cst = arith.constant dense<0.000000e+00> : vector<8x128xf32>
    %3 = tpu.matmul %1, %2, %cst {dimension_numbers = #tpu.dot_dimension_numbers<[1], [0], [0], [1], [0, 0, 1, 1], [], []>} : vector<8x128xbf16>, vector<128x128xbf16>, vector<8x128xf32> -> vector<8x128xf32>
    %cst_3 = arith.constant dense<0.000000e+00> : vector<128xf32>
    %4 = vector.multi_reduction <add>, %3, %cst_3 [0] : vector<8x128xf32> to vector<128xf32>
    %5 = vector.shape_cast %4 : vector<128xf32> to vector<1x128xf32>
    %cst_4 = arith.constant 1.250000e-01 : f32
    %6 = vector.broadcast %cst_4 : f32 to vector<1x128xf32>
    %7 = arith.mulf %5, %6 : vector<1x128xf32>
    %8 = vector.broadcast %7 : vector<1x128xf32> to vector<8x128xf32>
    %9 = arith.subf %3, %8 : vector<8x128xf32>
    %10 = arith.mulf %9, %9 : vector<8x128xf32>
    %cst_5 = arith.constant dense<0.000000e+00> : vector<128xf32>
    %11 = vector.multi_reduction <add>, %10, %cst_5 [0] : vector<8x128xf32> to vector<128xf32>
    %12 = vector.shape_cast %11 : vector<128xf32> to vector<1x128xf32>
    %cst_6 = arith.constant 1.250000e-01 : f32
    %13 = vector.broadcast %cst_6 : f32 to vector<1x128xf32>
    %14 = arith.mulf %12, %13 : vector<1x128xf32>
    %cst_7 = arith.constant 9.99999974E-6 : f32
    %15 = vector.broadcast %cst_7 : f32 to vector<1x128xf32>
    %16 = arith.addf %14, %15 : vector<1x128xf32>
    %17 = math.rsqrt %16 : vector<1x128xf32>
    %18 = vector.broadcast %17 : vector<1x128xf32> to vector<8x128xf32>
    %19 = arith.mulf %9, %18 : vector<8x128xf32>
    %cst_8 = arith.constant 0.000000e+00 : f32
    %20 = vector.broadcast %cst_8 : f32 to vector<8x128xf32>
    %21 = arith.maximumf %19, %20 : vector<8x128xf32>
    %22 = arith.truncf %21 : vector<8x128xf32> to vector<8x128xbf16>
    %c0_9 = arith.constant 0 : index
    %c0_10 = arith.constant 0 : index
    %23 = vector.load %arg3[%c0_9, %c0_10] : memref<128x128xbf16, #tpu.memory_space<vmem>>, vector<128x128xbf16>
    %cst_11 = arith.constant dense<0.000000e+00> : vector<8x128xf32>
    %24 = tpu.matmul %22, %23, %cst_11 {dimension_numbers = #tpu.dot_dimension_numbers<[1], [0], [0], [1], [0, 0, 1, 1], [], []>} : vector<8x128xbf16>, vector<128x128xbf16>, vector<8x128xf32> -> vector<8x128xf32>
    %cst_12 = arith.constant dense<0.000000e+00> : vector<128xf32>
    %25 = vector.multi_reduction <add>, %24, %cst_12 [0] : vector<8x128xf32> to vector<128xf32>
    %26 = vector.shape_cast %25 : vector<128xf32> to vector<1x128xf32>
    %cst_13 = arith.constant 1.250000e-01 : f32
    %27 = vector.broadcast %cst_13 : f32 to vector<1x128xf32>
    %28 = arith.mulf %26, %27 : vector<1x128xf32>
    %29 = vector.broadcast %28 : vector<1x128xf32> to vector<8x128xf32>
    %30 = arith.subf %24, %29 : vector<8x128xf32>
    %31 = arith.mulf %30, %30 : vector<8x128xf32>
    %cst_14 = arith.constant dense<0.000000e+00> : vector<128xf32>
    %32 = vector.multi_reduction <add>, %31, %cst_14 [0] : vector<8x128xf32> to vector<128xf32>
    %33 = vector.shape_cast %32 : vector<128xf32> to vector<1x128xf32>
    %cst_15 = arith.constant 1.250000e-01 : f32
    %34 = vector.broadcast %cst_15 : f32 to vector<1x128xf32>
    %35 = arith.mulf %33, %34 : vector<1x128xf32>
    %cst_16 = arith.constant 9.99999974E-6 : f32
    %36 = vector.broadcast %cst_16 : f32 to vector<1x128xf32>
    %37 = arith.addf %35, %36 : vector<1x128xf32>
    %38 = math.rsqrt %37 : vector<1x128xf32>
    %39 = vector.broadcast %38 : vector<1x128xf32> to vector<8x128xf32>
    %40 = arith.mulf %30, %39 : vector<8x128xf32>
    %cst_17 = arith.constant 0.000000e+00 : f32
    %41 = vector.broadcast %cst_17 : f32 to vector<8x128xf32>
    %42 = arith.maximumf %40, %41 : vector<8x128xf32>
    %43 = arith.truncf %42 : vector<8x128xf32> to vector<8x128xbf16>
    %c0_18 = arith.constant 0 : index
    %c0_19 = arith.constant 0 : index
    %44 = vector.load %arg4[%c0_18, %c0_19] : memref<128x128xbf16, #tpu.memory_space<vmem>>, vector<128x128xbf16>
    %cst_20 = arith.constant dense<0.000000e+00> : vector<8x128xf32>
    %45 = tpu.matmul %43, %44, %cst_20 {dimension_numbers = #tpu.dot_dimension_numbers<[1], [0], [0], [1], [0, 0, 1, 1], [], []>} : vector<8x128xbf16>, vector<128x128xbf16>, vector<8x128xf32> -> vector<8x128xf32>
    %cst_21 = arith.constant dense<0.000000e+00> : vector<128xf32>
    %46 = vector.multi_reduction <add>, %45, %cst_21 [0] : vector<8x128xf32> to vector<128xf32>
    %47 = vector.shape_cast %46 : vector<128xf32> to vector<1x128xf32>
    %cst_22 = arith.constant 1.250000e-01 : f32
    %48 = vector.broadcast %cst_22 : f32 to vector<1x128xf32>
    %49 = arith.mulf %47, %48 : vector<1x128xf32>
    %50 = vector.broadcast %49 : vector<1x128xf32> to vector<8x128xf32>
    %51 = arith.subf %45, %50 : vector<8x128xf32>
    %52 = arith.mulf %51, %51 : vector<8x128xf32>
    %cst_23 = arith.constant dense<0.000000e+00> : vector<128xf32>
    %53 = vector.multi_reduction <add>, %52, %cst_23 [0] : vector<8x128xf32> to vector<128xf32>
    %54 = vector.shape_cast %53 : vector<128xf32> to vector<1x128xf32>
    %cst_24 = arith.constant 1.250000e-01 : f32
    %55 = vector.broadcast %cst_24 : f32 to vector<1x128xf32>
    %56 = arith.mulf %54, %55 : vector<1x128xf32>
    %cst_25 = arith.constant 9.99999974E-6 : f32
    %57 = vector.broadcast %cst_25 : f32 to vector<1x128xf32>
    %58 = arith.addf %56, %57 : vector<1x128xf32>
    %59 = math.rsqrt %58 : vector<1x128xf32>
    %60 = vector.broadcast %59 : vector<1x128xf32> to vector<8x128xf32>
    %61 = arith.mulf %51, %60 : vector<8x128xf32>
    %cst_26 = arith.constant 0.000000e+00 : f32
    %62 = vector.broadcast %cst_26 : f32 to vector<8x128xf32>
    %63 = arith.maximumf %61, %62 : vector<8x128xf32>
    %c0_27 = arith.constant 0 : index
    %c0_28 = arith.constant 0 : index
    %64 = vector.load %arg5[%c0_27, %c0_28] : memref<8x128xf32, #tpu.memory_space<vmem>>, vector<8x128xf32>
    tpu.vector_store %arg5[%c0_27, %c0_28], %63 {strides = array<i32>} : memref<8x128xf32, #tpu.memory_space<vmem>>, vector<8x128xf32>,
    return
  }
  func.func @transform_0(%arg0: i32) -> (i32, i32) {
    %c0_i32 = arith.constant 0 : i32
    %c0_i32_0 = arith.constant 0 : i32
    %c0_i32_1 = arith.constant 0 : i32
    return %c0_i32, %c0_i32_0 : i32, i32
  }
  func.func @transform_1(%arg0: i32) -> (i32, i32) {
    %c0_i32 = arith.constant 0 : i32
    %c0_i32_0 = arith.constant 0 : i32
    %c0_i32_1 = arith.constant 0 : i32
    return %c0_i32, %c0_i32_0 : i32, i32
  }
  func.func @transform_2(%arg0: i32) -> (i32, i32) {
    %c0_i32 = arith.constant 0 : i32
    %c0_i32_0 = arith.constant 0 : i32
    %c0_i32_1 = arith.constant 0 : i32
    return %c0_i32, %c0_i32_0 : i32, i32
  }
  func.func @transform_3(%arg0: i32) -> (i32, i32) {
    %c0_i32 = arith.constant 0 : i32
    %c0_i32_0 = arith.constant 0 : i32
    %c0_i32_1 = arith.constant 0 : i32
    return %c0_i32, %c0_i32_0 : i32, i32
  }
  func.func @transform_4(%arg0: i32) -> (i32, i32) {
    %c0_i32 = arith.constant 0 : i32
    %c0_i32_0 = arith.constant 0 : i32
    %c0_i32_1 = arith.constant 0 : i32
    return %c0_i32, %c0_i32_0 : i32, i32
  }
}

</mosaic_0001>

<llo_original>
// kernel: deep_forward.1
$region0: #{deep_forward.1}
  #allocation0 [shape = 'u32[]', space=smem, size = 0x4, offset = 0x4, fixed_abs, tag = 'smem constant byte address 0x4 - core index']
  #allocation1 [shape = 'u32[144,128]{1,0:T(1,128)}', space=vmem, size = 0x12000, scoped, tag = 'internal scratch']
  %s0 = inlined_call_operand.vmem [shape: f32[8,128], index: 0, kind: input, shape index: {}]
  %s1 = inlined_call_operand.hbm [shape: bf16[128,128], index: 1, kind: input, shape index: {}]
  %s2 = inlined_call_operand.hbm [shape: bf16[128,128], index: 2, kind: input, shape index: {}]
  %s3 = inlined_call_operand.hbm [shape: bf16[128,128], index: 3, kind: input, shape index: {}]
  %s4 = inlined_call_operand.hbm [shape: f32[8,128], index: 4, kind: output, shape index: {}]
  %s5 = sld [smem:[#allocation0]]
  $region38: #{deep_forward.1} parent=0
    _
  %s7 = ssub.s32 1, %s5
  %s8 = scalar_select 0, %s7, %s5
  $region1: #{deep_forward.1} parent=0
    #allocation2 [shape = 'u8[32768]{0}', space=vmem, size = 0x8000, scoped, tag = 'input window, operand 1, single buffered']
    #allocation3 [shape = 's32[1]{0}', space=sflag, size = 0x4, scoped, tag = 'scoped memory for deep_forward.1']
    #allocation4 [shape = 's32[1]{0}', space=sflag, size = 0x4, scoped, tag = 'scoped memory for deep_forward.1']
    #allocation5 [shape = 'u8[32768]{0}', space=vmem, size = 0x8000, scoped, tag = 'input window, operand 2, single buffered']
    #allocation6 [shape = 's32[1]{0}', space=sflag, size = 0x4, scoped, tag = 'scoped memory for deep_forward.1']
    #allocation7 [shape = 'u8[32768]{0}', space=vmem, size = 0x8000, scoped, tag = 'input window, operand 3, single buffered']
    #allocation8 [shape = 'u8[4096]{0}', space=vmem, size = 0x1000, scoped, tag = 'output window, operand 0, single buffered']
    %9 = vsyncpa [#allocation3], 0
    %10 = vsyncpa [#allocation6], 0
    %11 = vsyncpa [#allocation4], 0
    // Predicated region
    $region2: #{deep_forward.1} parent=1 // pred_check
      _
    $region3: #{deep_forward.1} parent=1 // pred_check_branch
      %13 = sbr.rel (0) target = $region5
    $region4: #{deep_forward.1} parent=1 // pred_region
      _
    $region5: #{deep_forward.1} parent=1 // pred_fallthru
      _
    // Predicated region
    $region6: #{deep_forward.1} parent=1 // pred_check
      _
    $region7: #{deep_forward.1} parent=1 // pred_check_branch
      %15 = sbr.rel (0) target = $region9
    $region8: #{deep_forward.1} parent=1 // pred_region
      %s17 = ssub.s32 1024, 1024
      %18 = vsyncadd [#allocation3], %s17
      %s19 = sshll.u32 [#allocation2], 4
      %s20 = int_to_ptr.vmem [resolvable:$true] %s19
      %25 = dma.hbm_to_vmem [thread:$0]  %s1, 1024, %s20, [#allocation3], 64, 64, 4
    $region9: #{deep_forward.1} parent=1 // pred_fallthru
      _
    // Predicated region
    $region10: #{deep_forward.1} parent=1 // pred_check
      _
    $region11: #{deep_forward.1} parent=1 // pred_check_branch
      %27 = sbr.rel (0) target = $region13
    $region12: #{deep_forward.1} parent=1 // pred_region
      %s29 = ssub.s32 1024, 1024
      %30 = vsyncadd [#allocation6], %s29
      %s31 = sshll.u32 [#allocation5], 4
      %s32 = int_to_ptr.vmem [resolvable:$true] %s31
      %37 = dma.hbm_to_vmem [thread:$0]  %s2, 1024, %s32, [#allocation6], 64, 64, 4
    $region13: #{deep_forward.1} parent=1 // pred_fallthru
      _
    // Predicated region
    $region14: #{deep_forward.1} parent=1 // pred_check
      _
    $region15: #{deep_forward.1} parent=1 // pred_check_branch
      %39 = sbr.rel (0) target = $region17
    $region16: #{deep_forward.1} parent=1 // pred_region
      %s41 = ssub.s32 1024, 1024
      %42 = vsyncadd [#allocation6], %s41
      %s43 = sshll.u32 [#allocation7], 4
      %s44 = int_to_ptr.vmem [resolvable:$true] %s43
      %49 = dma.hbm_to_vmem [thread:$0]  %s3, 1024, %s44, [#allocation6], 64, 64, 4
    $region17: #{deep_forward.1} parent=1 // pred_fallthru
      _
    // Predicated region
    $region18: #{deep_forward.1} parent=1 // pred_check
      _
    $region19: #{deep_forward.1} parent=1 // pred_check_branch
      %51 = sbr.rel (0) target = $region21
    $region20: #{deep_forward.1} parent=1 // pred_region
      %52 = dma.done [#allocation3], 1024
    $region21: #{deep_forward.1} parent=1 // pred_fallthru
      _
    // Predicated region
    $region22: #{deep_forward.1} parent=1 // pred_check
      _
    $region23: #{deep_forward.1} parent=1 // pred_check_branch
      %54 = sbr.rel (0) target = $region25
    $region24: #{deep_forward.1} parent=1 // pred_region
      %55 = dma.done [#allocation6], 1024
    $region25: #{deep_forward.1} parent=1 // pred_fallthru
      _
    // Predicated region
    $region26: #{deep_forward.1} parent=1 // pred_check
      _
    $region27: #{deep_forward.1} parent=1 // pred_check_branch
      %57 = sbr.rel (0) target = $region29
    $region28: #{deep_forward.1} parent=1 // pred_region
      %58 = dma.done [#allocation6], 1024
    $region29: #{deep_forward.1} parent=1 // pred_fallthru
      _
    %v60 = vld [vmem:[%s0] sm:$0xff]
    %v61 = vpack.c.bf16 %v60, %v60
    %v62 = vld [vmem:[#allocation2] sm:$0xf]
    %v63 = vld [vmem:[#allocation2 + $0x4] sm:$0xf]
    %v64 = vld [vmem:[#allocation2 + $0x8] sm:$0xf]
    %v65 = vld [vmem:[#allocation2 + $0xc] sm:$0xf]
    %v66 = vld [vmem:[#allocation2 + $0x10] sm:$0xf]
    %v67 = vld [vmem:[#allocation2 + $0x14] sm:$0xf]
    %v68 = vld [vmem:[#allocation2 + $0x18] sm:$0xf]
    %v69 = vld [vmem:[#allocation2 + $0x1c] sm:$0xf]
    %v70 = vld [vmem:[#allocation2 + $0x20] sm:$0xf]
    %v71 = vld [vmem:[#allocation2 + $0x24] sm:$0xf]
    %v72 = vld [vmem:[#allocation2 + $0x28] sm:$0xf]
    %v73 = vld [vmem:[#allocation2 + $0x2c] sm:$0xf]
    %v74 = vld [vmem:[#allocation2 + $0x30] sm:$0xf]
    %v75 = vld [vmem:[#allocation2 + $0x34] sm:$0xf]
    %v76 = vld [vmem:[#allocation2 + $0x38] sm:$0xf]
    %v77 = vld [vmem:[#allocation2 + $0x3c] sm:$0xf]
    %v94 = vunpack.c.l.b16 %v62
    %v95 = vunpack.c.l.b16 %v63
    %v96 = vunpack.c.l.b16 %v64
    %v97 = vunpack.c.l.b16 %v65
    %v98 = vunpack.c.l.b16 %v66
    %v99 = vunpack.c.l.b16 %v67
    %v100 = vunpack.c.l.b16 %v68
    %v101 = vunpack.c.l.b16 %v69
    %v102 = vunpack.c.l.b16 %v70
    %v103 = vunpack.c.l.b16 %v71
    %v104 = vunpack.c.l.b16 %v72
    %v105 = vunpack.c.l.b16 %v73
    %v106 = vunpack.c.l.b16 %v74
    %v107 = vunpack.c.l.b16 %v75
    %v108 = vunpack.c.l.b16 %v76
    %v109 = vunpack.c.l.b16 %v77
    %v110 = vpack.c.b16 %v95, %v94
    %v111 = vpack.c.b16 %v97, %v96
    %v112 = vpack.c.b16 %v99, %v98
    %v113 = vpack.c.b16 %v101, %v100
    %v114 = vpack.c.b16 %v103, %v102
    %v115 = vpack.c.b16 %v105, %v104
    %v116 = vpack.c.b16 %v107, %v106
    %v117 = vpack.c.b16 %v109, %v108
    %126 = vmatprep.subr.bf16.mxu0 0
    %127 = vmatpush1.bf16.msra.mxu0 %v117
    %128 = vmatprep.subr.bf16.mxu0 0
    %129 = vmatpush1.bf16.msra.mxu0 %v116
    %130 = vmatprep.subr.bf16.mxu0 0
    %131 = vmatpush1.bf16.msra.mxu0 %v115
    %132 = vmatprep.subr.bf16.mxu0 0
    %133 = vmatpush1.bf16.msra.mxu0 %v114
    %134 = vmatprep.subr.bf16.mxu0 0
    %135 = vmatpush1.bf16.msra.mxu0 %v113
    %136 = vmatprep.subr.bf16.mxu0 0
    %137 = vmatpush1.bf16.msra.mxu0 %v112
    %138 = vmatprep.subr.bf16.mxu0 0
    %139 = vmatpush1.bf16.msra.mxu0 %v111
    %140 = vmatprep.subr.bf16.mxu0 0
    %141 = vmatpush1.bf16.msra.mxu0 %v110
    %142 = vmatprep.subr.bf16.mxu0 0
    %143 = vmatpush2.bf16.msra.mxu0 0
    %144 = vmatprep.subr.bf16.mxu0 0
    %145 = vmatpush2.bf16.msra.mxu0 0
    %146 = vmatprep.subr.bf16.mxu0 0
    %147 = vmatpush2.bf16.msra.mxu0 0
    %148 = vmatprep.subr.bf16.mxu0 0
    %149 = vmatpush2.bf16.msra.mxu0 0
    %150 = vmatprep.subr.bf16.mxu0 0
    %151 = vmatpush2.bf16.msra.mxu0 0
    %152 = vmatprep.subr.bf16.mxu0 0
    %153 = vmatpush2.bf16.msra.mxu0 0
    %154 = vmatprep.subr.bf16.mxu0 0
    %155 = vmatpush2.bf16.msra.mxu0 0
    %156 = vmatprep.subr.bf16.mxu0 0
    %157 = vmatpush2.bf16.msra.mxu0 0
    %158 = vmatprep.mubr.bf16.mxu0 0
    %159 = vmatmul.mubr.bf16.gmra.mxu0 %v61
    %v160 = vpop.f32.mrf.mxu0
    %v161 = vadd.f32 0.0, %v160
    %v162 = vpop.f32.mrf.mxu0
    %v163 = vpop.f32.mrf.mxu0
    %v164 = vpop.f32.mrf.mxu0
    %165 = vdwg.mxu0
    %v166 = vrot.slane %v161, 4
    %v167 = vadd.f32 %v161, %v166
    %v168 = vrot.slane %v167, 2
    %v169 = vadd.f32 %v167, %v168
    %v170 = vrot.slane %v169, 1
    %v171 = vadd.f32 %v169, %v170
    %v172 = vmul.f32 %v171, 0.125
    %v173 = vsub.f32 %v161, %v172
    %v174 = vmul.f32 %v173, %v173
    %v175 = vrot.slane %v174, 4
    %v176 = vadd.f32 %v174, %v175
    %v177 = vrot.slane %v176, 2
    %v178 = vadd.f32 %v176, %v177
    %v179 = vrot.slane %v178, 1
    %v180 = vadd.f32 %v178, %v179
    %v181 = vmul.f32 %v180, 0.125
    %v182 = vadd.f32 %v181, 1e-05
    %v183 = vrsqrt.pop %v182
    %v184 = vmul.f32 %v173, %v183
    %v185 = vmax.f32 %v184, 0.0
    %v186 = vpack.c.bf16 %v185, %v185
    %v187 = vld [vmem:[#allocation5] sm:$0xf]
    %v188 = vld [vmem:[#allocation5 + $0x4] sm:$0xf]
    %v189 = vld [vmem:[#allocation5 + $0x8] sm:$0xf]
    %v190 = vld [vmem:[#allocation5 + $0xc] sm:$0xf]
    %v191 = vld [vmem:[#allocation5 + $0x10] sm:$0xf]
    %v192 = vld [vmem:[#allocation5 + $0x14] sm:$0xf]
    %v193 = vld [vmem:[#allocation5 + $0x18] sm:$0xf]
    %v194 = vld [vmem:[#allocation5 + $0x1c] sm:$0xf]
    %v195 = vld [vmem:[#allocation5 + $0x20] sm:$0xf]
    %v196 = vld [vmem:[#allocation5 + $0x24] sm:$0xf]
    %v197 = vld [vmem:[#allocation5 + $0x28] sm:$0xf]
    %v198 = vld [vmem:[#allocation5 + $0x2c] sm:$0xf]
    %v199 = vld [vmem:[#allocation5 + $0x30] sm:$0xf]
    %v200 = vld [vmem:[#allocation5 + $0x34] sm:$0xf]
    %v201 = vld [vmem:[#allocation5 + $0x38] sm:$0xf]
    %v202 = vld [vmem:[#allocation5 + $0x3c] sm:$0xf]
    %v219 = vunpack.c.l.b16 %v187
    %v220 = vunpack.c.l.b16 %v188
    %v221 = vunpack.c.l.b16 %v189
    %v222 = vunpack.c.l.b16 %v190
    %v223 = vunpack.c.l.b16 %v191
    %v224 = vunpack.c.l.b16 %v192
    %v225 = vunpack.c.l.b16 %v193
    %v226 = vunpack.c.l.b16 %v194
    %v227 = vunpack.c.l.b16 %v195
    %v228 = vunpack.c.l.b16 %v196
    %v229 = vunpack.c.l.b16 %v197
    %v230 = vunpack.c.l.b16 %v198
    %v231 = vunpack.c.l.b16 %v199
    %v232 = vunpack.c.l.b16 %v200
    %v233 = vunpack.c.l.b16 %v201
    %v234 = vunpack.c.l.b16 %v202
    %v235 = vpack.c.b16 %v220, %v219
    %v236 = vpack.c.b16 %v222, %v221
    %v237 = vpack.c.b16 %v224, %v223
    %v238 = vpack.c.b16 %v226, %v225
    %v239 = vpack.c.b16 %v228, %v227
    %v240 = vpack.c.b16 %v230, %v229
    %v241 = vpack.c.b16 %v232, %v231
    %v242 = vpack.c.b16 %v234, %v233
    %251 = vmatprep.subr.bf16.mxu0 0
    %252 = vmatpush1.bf16.msra.mxu0 %v242
    %253 = vmatprep.subr.bf16.mxu0 0
    %254 = vmatpush1.bf16.msra.mxu0 %v241
    %255 = vmatprep.subr.bf16.mxu0 0
    %256 = vmatpush1.bf16.msra.mxu0 %v240
    %257 = vmatprep.subr.bf16.mxu0 0
    %258 = vmatpush1.bf16.msra.mxu0 %v239
    %259 = vmatprep.subr.bf16.mxu0 0
    %260 = vmatpush1.bf16.msra.mxu0 %v238
    %261 = vmatprep.subr.bf16.mxu0 0
    %262 = vmatpush1.bf16.msra.mxu0 %v237
    %263 = vmatprep.subr.bf16.mxu0 0
    %264 = vmatpush1.bf16.msra.mxu0 %v236
    %265 = vmatprep.subr.bf16.mxu0 0
    %266 = vmatpush1.bf16.msra.mxu0 %v235
    %267 = vmatprep.subr.bf16.mxu0 0
    %268 = vmatpush2.bf16.msra.mxu0 0
    %269 = vmatprep.subr.bf16.mxu0 0
    %270 = vmatpush2.bf16.msra.mxu0 0
    %271 = vmatprep.subr.bf16.mxu0 0
    %272 = vmatpush2.bf16.msra.mxu0 0
    %273 = vmatprep.subr.bf16.mxu0 0
    %274 = vmatpush2.bf16.msra.mxu0 0
    %275 = vmatprep.subr.bf16.mxu0 0
    %276 = vmatpush2.bf16.msra.mxu0 0
    %277 = vmatprep.subr.bf16.mxu0 0
    %278 = vmatpush2.bf16.msra.mxu0 0
    %279 = vmatprep.subr.bf16.mxu0 0
    %280 = vmatpush2.bf16.msra.mxu0 0
    %281 = vmatprep.subr.bf16.mxu0 0
    %282 = vmatpush2.bf16.msra.mxu0 0
    %283 = vmatprep.mubr.bf16.mxu0 0
    %284 = vmatmul.mubr.bf16.gmra.mxu0 %v186
    %v285 = vpop.f32.mrf.mxu0
    %v286 = vadd.f32 0.0, %v285
    %v287 = vpop.f32.mrf.mxu0
    %v288 = vpop.f32.mrf.mxu0
    %v289 = vpop.f32.mrf.mxu0
    %290 = vdwg.mxu0
    %v291 = vrot.slane %v286, 4
    %v292 = vadd.f32 %v286, %v291
    %v293 = vrot.slane %v292, 2
    %v294 = vadd.f32 %v292, %v293
    %v295 = vrot.slane %v294, 1
    %v296 = vadd.f32 %v294, %v295
    %v297 = vmul.f32 %v296, 0.125
    %v298 = vsub.f32 %v286, %v297
    %v299 = vmul.f32 %v298, %v298
    %v300 = vrot.slane %v299, 4
    %v301 = vadd.f32 %v299, %v300
    %v302 = vrot.slane %v301, 2
    %v303 = vadd.f32 %v301, %v302
    %v304 = vrot.slane %v303, 1
    %v305 = vadd.f32 %v303, %v304
    %v306 = vmul.f32 %v305, 0.125
    %v307 = vadd.f32 %v306, 1e-05
    %v308 = vrsqrt.pop %v307
    %v309 = vmul.f32 %v298, %v308
    %v310 = vmax.f32 %v309, 0.0
    %v311 = vpack.c.bf16 %v310, %v310
    %v312 = vld [vmem:[#allocation7] sm:$0xf]
    %v313 = vld [vmem:[#allocation7 + $0x4] sm:$0xf]
    %v314 = vld [vmem:[#allocation7 + $0x8] sm:$0xf]
    %v315 = vld [vmem:[#allocation7 + $0xc] sm:$0xf]
    %v316 = vld [vmem:[#allocation7 + $0x10] sm:$0xf]
    %v317 = vld [vmem:[#allocation7 + $0x14] sm:$0xf]
    %v318 = vld [vmem:[#allocation7 + $0x18] sm:$0xf]
    %v319 = vld [vmem:[#allocation7 + $0x1c] sm:$0xf]
    %v320 = vld [vmem:[#allocation7 + $0x20] sm:$0xf]
    %v321 = vld [vmem:[#allocation7 + $0x24] sm:$0xf]
    %v322 = vld [vmem:[#allocation7 + $0x28] sm:$0xf]
    %v323 = vld [vmem:[#allocation7 + $0x2c] sm:$0xf]
    %v324 = vld [vmem:[#allocation7 + $0x30] sm:$0xf]
    %v325 = vld [vmem:[#allocation7 + $0x34] sm:$0xf]
    %v326 = vld [vmem:[#allocation7 + $0x38] sm:$0xf]
    %v327 = vld [vmem:[#allocation7 + $0x3c] sm:$0xf]
    %v344 = vunpack.c.l.b16 %v312
    %v345 = vunpack.c.l.b16 %v313
    %v346 = vunpack.c.l.b16 %v314
    %v347 = vunpack.c.l.b16 %v315
    %v348 = vunpack.c.l.b16 %v316
    %v349 = vunpack.c.l.b16 %v317
    %v350 = vunpack.c.l.b16 %v318
    %v351 = vunpack.c.l.b16 %v319
    %v352 = vunpack.c.l.b16 %v320
    %v353 = vunpack.c.l.b16 %v321
    %v354 = vunpack.c.l.b16 %v322
    %v355 = vunpack.c.l.b16 %v323
    %v356 = vunpack.c.l.b16 %v324
    %v357 = vunpack.c.l.b16 %v325
    %v358 = vunpack.c.l.b16 %v326
    %v359 = vunpack.c.l.b16 %v327
    %v360 = vpack.c.b16 %v345, %v344
    %v361 = vpack.c.b16 %v347, %v346
    %v362 = vpack.c.b16 %v349, %v348
    %v363 = vpack.c.b16 %v351, %v350
    %v364 = vpack.c.b16 %v353, %v352
    %v365 = vpack.c.b16 %v355, %v354
    %v366 = vpack.c.b16 %v357, %v356
    %v367 = vpack.c.b16 %v359, %v358
    %376 = vmatprep.subr.bf16.mxu0 0
    %377 = vmatpush1.bf16.msra.mxu0 %v367
    %378 = vmatprep.subr.bf16.mxu0 0
    %379 = vmatpush1.bf16.msra.mxu0 %v366
    %380 = vmatprep.subr.bf16.mxu0 0
    %381 = vmatpush1.bf16.msra.mxu0 %v365
    %382 = vmatprep.subr.bf16.mxu0 0
    %383 = vmatpush1.bf16.msra.mxu0 %v364
    %384 = vmatprep.subr.bf16.mxu0 0
    %385 = vmatpush1.bf16.msra.mxu0 %v363
    %386 = vmatprep.subr.bf16.mxu0 0
    %387 = vmatpush1.bf16.msra.mxu0 %v362
    %388 = vmatprep.subr.bf16.mxu0 0
    %389 = vmatpush1.bf16.msra.mxu0 %v361
    %390 = vmatprep.subr.bf16.mxu0 0
    %391 = vmatpush1.bf16.msra.mxu0 %v360
    %392 = vmatprep.subr.bf16.mxu0 0
    %393 = vmatpush2.bf16.msra.mxu0 0
    %394 = vmatprep.subr.bf16.mxu0 0
    %395 = vmatpush2.bf16.msra.mxu0 0
    %396 = vmatprep.subr.bf16.mxu0 0
    %397 = vmatpush2.bf16.msra.mxu0 0
    %398 = vmatprep.subr.bf16.mxu0 0
    %399 = vmatpush2.bf16.msra.mxu0 0
    %400 = vmatprep.subr.bf16.mxu0 0
    %401 = vmatpush2.bf16.msra.mxu0 0
    %402 = vmatprep.subr.bf16.mxu0 0
    %403 = vmatpush2.bf16.msra.mxu0 0
    %404 = vmatprep.subr.bf16.mxu0 0
    %405 = vmatpush2.bf16.msra.mxu0 0
    %406 = vmatprep.subr.bf16.mxu0 0
    %407 = vmatpush2.bf16.msra.mxu0 0
    %408 = vmatprep.mubr.bf16.mxu0 0
    %409 = vmatmul.mubr.bf16.gmra.mxu0 %v311
    %v410 = vpop.f32.mrf.mxu0
    %v411 = vadd.f32 0.0, %v410
    %v412 = vpop.f32.mrf.mxu0
    %v413 = vpop.f32.mrf.mxu0
    %v414 = vpop.f32.mrf.mxu0
    %415 = vdwg.mxu0
    %v416 = vrot.slane %v411, 4
    %v417 = vadd.f32 %v411, %v416
    %v418 = vrot.slane %v417, 2
    %v419 = vadd.f32 %v417, %v418
    %v420 = vrot.slane %v419, 1
    %v421 = vadd.f32 %v419, %v420
    %v422 = vmul.f32 %v421, 0.125
    %v423 = vsub.f32 %v411, %v422
    %v424 = vmul.f32 %v423, %v423
    %v425 = vrot.slane %v424, 4
    %v426 = vadd.f32 %v424, %v425
    %v427 = vrot.slane %v426, 2
    %v428 = vadd.f32 %v426, %v427
    %v429 = vrot.slane %v428, 1
    %v430 = vadd.f32 %v428, %v429
    %v431 = vmul.f32 %v430, 0.125
    %v432 = vadd.f32 %v431, 1e-05
    %v433 = vrsqrt.pop %v432
    %v434 = vmul.f32 %v423, %v433
    %v435 = vmax.f32 %v434, 0.0
    %436 = vst [vmem:[#allocation8] sm:$0xff] %v435
    // Predicated region
    $region30: #{deep_forward.1} parent=1 // pred_check
      _
    $region31: #{deep_forward.1} parent=1 // pred_check_branch
      %438 = sbr.rel (0) target = $region33
    $region32: #{deep_forward.1} parent=1 // pred_region
      %s440 = ssub.s32 128, 128
      %441 = vsyncadd [#allocation4], %s440
      %s443 = sshll.u32 [#allocation8], 4
      %s444 = int_to_ptr.vmem [resolvable:$true] %s443
      %446 = dma.vmem_to_hbm [thread:$0]  %s444, 128, %s4, [#allocation4]
    $region33: #{deep_forward.1} parent=1 // pred_fallthru
      _
    // Predicated region
    $region34: #{deep_forward.1} parent=1 // pred_check
      _
    $region35: #{deep_forward.1} parent=1 // pred_check_branch
      %448 = sbr.rel (0) target = $region37
    $region36: #{deep_forward.1} parent=1 // pred_region
      %449 = dma.done [#allocation4], 128
    $region37: #{deep_forward.1} parent=1 // pred_fallthru
      _
    %450 = vsyncpa [#allocation3], 1
    %451 = vsyncpa [#allocation6], 1
    %452 = vsyncpa [#allocation4], 1

</llo_original>
